<compile_context>
chip_gen: v7x
topology: tpu7x:2x2x1
jax: 0.10.0
libtpu: 0.0.40
codegen_flags: <defaults>
</compile_context>

<pallas_src>
import functools

import jax
import jax.numpy as jnp
from jax import lax
from jax.experimental import pallas as pl
from jax.experimental.pallas import tpu as pltpu


def _round_up(x, m):
    return ((x + m - 1) // m) * m


def _lssm_chunk_kernel(ub_ref, ud_ref, at_ref, ct_ref, y_ref,
                       state_ref, states_ref, *, batch_tile, unroll):
    """One grid step == one chunk of t_chunk time steps for one batch shard.

    ub_ref:  (t_chunk*batch_tile, state_dim)   u_t @ B.T, row = t*batch_tile + b
    ud_ref:  (t_chunk*batch_tile, output_dim)  u_t @ D.T
    at_ref:  (state_dim, state_dim)            A.T  (compute dtype)
    ct_ref:  (state_dim, output_dim)           C.T  (compute dtype)
    y_ref:   (t_chunk*batch_tile, output_dim)  chunk outputs
    state_ref:  VMEM (batch_tile, state_dim) f32; persists across chunks.
    states_ref: VMEM (t_chunk*batch_tile, state_dim) f32; per-chunk staging of
                the new states for the batched output projection.
    """
    c = pl.program_id(1)

    # Zero the recurrent state (reset_state semantics) before chunk 0.
    @pl.when(c == 0)
    def _():
        state_ref[...] = jnp.zeros_like(state_ref)

    rows = ub_ref.shape[0]
    t_chunk = rows // batch_tile
    at = at_ref[...]

    def step(t, state):
        r = pl.multiple_of(t * batch_tile, batch_tile)
        # Serial dependency chain: a single small matmul + add per step.
        new_state = (
            jnp.dot(state.astype(at.dtype), at,
                    preferred_element_type=jnp.float32)
            + ub_ref[pl.ds(r, batch_tile), :]
        )
        # Stage the state for the chunk-level projection (off the chain).
        states_ref[pl.ds(r, batch_tile), :] = new_state
        return new_state

    # Bounded unroll: pipelines adjacent steps without the vreg-pressure
    # cliff of a full unroll at large batch_tile * state_dim.
    state_ref[...] = lax.fori_loop(0, t_chunk, step, state_ref[...],
                                   unroll=unroll)

    # Chunk-level output projection: one MXU-friendly matmul and one dense
    # block store instead of t_chunk tiny matmuls / masked per-step stores.
    y_ref[...] = (
        jnp.dot(states_ref[...].astype(ct_ref.dtype), ct_ref[...],
                preferred_element_type=jnp.float32)
        + ud_ref[...]
    ).astype(y_ref.dtype)


@functools.partial(
    jax.jit,
    static_argnames=("t_chunk", "num_batch_shards", "compute_dtype", "unroll"),
)
def lssm_forward(u, A, B, C, D, *, t_chunk=None, num_batch_shards=1,
                 compute_dtype=jnp.bfloat16, unroll=8):
    """u: (batch, seq_len, input_dim) -> (batch, seq_len, output_dim).

    compute_dtype: dtype of the A.T / C.T MXU operands (state carry and
      accumulation stay f32).  bf16 shortens the serial state@A.T latency;
      pass jnp.float32 for exact parity with an f32 reference.
    num_batch_shards: leading "parallel" grid axis over batch shards
      (set to 2 on v7x to occupy both TensorCores; 1 on v5e/v6e).
    """
    batch, seq_len, input_dim = u.shape
    state_dim = A.shape[0]
    output_dim = C.shape[0]

    u = u.astype(jnp.float32)
    A32 = jnp.asarray(A, jnp.float32)
    B32 = jnp.asarray(B, jnp.float32)
    C32 = jnp.asarray(C, jnp.float32)
    D32 = jnp.asarray(D, jnp.float32)
    A_t = A32.T.astype(compute_dtype)              # (state_dim, state_dim)
    C_t = C32.T.astype(compute_dtype)              # (state_dim, output_dim)

    # Batch shard/tile sizing.  batch_tile is rounded up to a multiple of 8 so
    # the flattened (time, batch) blocks are sublane-dense and every per-step
    # row slice is an aligned, unmasked access.
    num_bt = max(1, int(num_batch_shards))
    batch_tile = _round_up(pl.cdiv(batch, num_bt), 8)
    padded_batch = num_bt * batch_tile

    # Time-chunk sizing: target a few hundred rows per chunk (amortizes the
    # ~0.35us/grid-step overhead; keeps the chunk projection MXU-friendly)
    # while capping the ub block at ~4 MiB so double-buffering fits v7x VMEM.
    if t_chunk is None:
        max_rows_by_vmem = max(8, (4 << 20) // (state_dim * 4))
        target_rows = min(512, max_rows_by_vmem)
        t_chunk = max(1, min(seq_len, target_rows // batch_tile))
    t_chunk = max(1, int(t_chunk))
    seq_pad = _round_up(seq_len, t_chunk)
    num_chunks = seq_pad // t_chunk
    rows = t_chunk * batch_tile

    # Pad u (input_dim is tiny) rather than the large projected tensors.
    # Padded batch rows / tail time steps see zero inputs, keep a zero state,
    # and their outputs are sliced off below.
    if padded_batch != batch or seq_pad != seq_len:
        u = jnp.pad(u, ((0, padded_batch - batch),
                        (0, seq_pad - seq_len), (0, 0)))

    # Hoisted input projections, emitted directly in per-shard
    # (time, batch_tile)-flattened row layout: row index = t*batch_tile + b.
    u_g = u.reshape(num_bt, batch_tile, seq_pad, input_dim)
    ub = jnp.einsum("gbti,si->gtbs", u_g, B32).reshape(
        num_bt, seq_pad * batch_tile, state_dim)
    ud = jnp.einsum("gbti,oi->gtbo", u_g, D32).reshape(
        num_bt, seq_pad * batch_tile, output_dim)

    # Explicit VMEM budget: double-buffered pipeline blocks + scratch, with
    # (8, 128) tile padding.
    def tile_bytes(r, c, itemsize):
        return _round_up(r, 8) * _round_up(c, 128) * itemsize

    cbytes = jnp.dtype(compute_dtype).itemsize
    vmem_est = (
        2 * tile_bytes(rows, state_dim, 4)                 # ub (x2 buffers)
        + 4 * tile_bytes(rows, output_dim, 4)              # ud + y (x2 each)
        + 2 * tile_bytes(state_dim, state_dim, cbytes)     # A.T
        + 2 * tile_bytes(state_dim, output_dim, cbytes)    # C.T
        + tile_bytes(batch_tile, state_dim, 4)             # carried state
        + tile_bytes(rows, state_dim, 4)                   # staged states
    )
    vmem_limit = min(128 << 20,
                     max(32 << 20, int(vmem_est * 3 // 2) + (2 << 20)))

    kernel = functools.partial(
        _lssm_chunk_kernel, batch_tile=batch_tile, unroll=unroll)

    grid_spec = pltpu.PrefetchScalarGridSpec(
        num_scalar_prefetch=0,
        grid=(num_bt, num_chunks),
        in_specs=[
            pl.BlockSpec((None, rows, state_dim), lambda g, c: (g, c, 0)),
            pl.BlockSpec((None, rows, output_dim), lambda g, c: (g, c, 0)),
            pl.BlockSpec((state_dim, state_dim), lambda g, c: (0, 0)),
            pl.BlockSpec((state_dim, output_dim), lambda g, c: (0, 0)),
        ],
        out_specs=pl.BlockSpec((None, rows, output_dim),
                               lambda g, c: (g, c, 0)),
        scratch_shapes=[
            pltpu.VMEM((batch_tile, state_dim), jnp.float32),
            pltpu.VMEM((rows, state_dim), jnp.float32),
        ],
    )

    y_rows = pl.pallas_call(
        kernel,
        out_shape=jax.ShapeDtypeStruct(
            (num_bt, seq_pad * batch_tile, output_dim), jnp.float32),
        grid_spec=grid_spec,
        compiler_params=pltpu.CompilerParams(
            # Batch shards are independent (parallel -> v7x megacore); the
            # recurrence over time chunks is strictly sequential.
            dimension_semantics=("parallel", "arbitrary"),
            vmem_limit_bytes=vmem_limit,
        ),
    )(ub, ud, A_t, C_t)

    # (shard, (t, b) rows, out) -> (batch, seq, out); drop padding.
    y = y_rows.reshape(num_bt, seq_pad, batch_tile, output_dim)
    y = jnp.transpose(y, (0, 2, 1, 3)).reshape(padded_batch, seq_pad,
                                               output_dim)
    return y[:batch, :seq_len, :]


def lssm_reference(u, A, B, C, D):
    """Pure-JAX reference mirroring the PyTorch loop."""
    batch, seq_len, _ = u.shape
    state = jnp.zeros((batch, A.shape[0]), jnp.float32)
    ys = []
    for t in range(seq_len):
        state = state @ A.T + u[:, t, :] @ B.T
        ys.append(state @ C.T + u[:, t, :] @ D.T)
    return jnp.stack(ys, axis=1)


if __name__ == "__main__":
    # Small deterministic problem: batch=2, seq=8, input_dim=4, state_dim=32,
    # output_dim=4.
    batch, seq_len = 2, 8
    input_dim, state_dim, output_dim = 4, 32, 4

    key = jax.random.PRNGKey(0)
    k_u, k_a, k_b, k_c, k_d = jax.random.split(key, 5)

    u = jax.random.normal(k_u, (batch, seq_len, input_dim), jnp.float32)
    # Keep A small-ish so the recurrence stays well conditioned.
    A = 0.1 * jax.random.normal(k_a, (state_dim, state_dim), jnp.float32)
    B = jax.random.normal(k_b, (state_dim, input_dim), jnp.float32)
    C = jax.random.normal(k_c, (output_dim, state_dim), jnp.float32)
    D = jax.random.normal(k_d, (output_dim, input_dim), jnp.float32)

    y_ref = lssm_reference(u, A, B, C, D)

    # f32 MXU operands: numerical parity with the f32 reference recurrence.
    y_f32 = jax.block_until_ready(
        lssm_forward(u, A, B, C, D, compute_dtype=jnp.float32))
    assert y_f32.shape == (batch, seq_len, output_dim)
    assert jnp.allclose(y_f32, y_ref, atol=1e-3, rtol=1e-3), "f32 mismatch"

    # Default path (bf16 A.T / C.T operands, f32 state carry): validate at a
    # bf16-appropriate tolerance relative to the output scale.
    y_bf16 = jax.block_until_ready(lssm_forward(u, A, B, C, D))
    assert y_bf16.shape == (batch, seq_len, output_dim)
    max_err = float(jnp.max(jnp.abs(y_bf16 - y_ref)))
    scale = float(jnp.max(jnp.abs(y_ref)))
    assert max_err <= 0.05 * scale + 1e-2, (
        f"bf16 mismatch: err={max_err} scale={scale}")

    print("KERNEL_OK")
</pallas_src>

<mosaic_0001>
module attributes {stable_mosaic.version = 11 : i64} {
  func.func @_lssm_chunk_kernel(%arg0: i32, %arg1: i32, %arg2: memref<1x64x32xf32, #tpu.memory_space<vmem>>, %arg3: memref<1x64x4xf32, #tpu.memory_space<vmem>>, %arg4: memref<32x32xf32, #tpu.memory_space<vmem>>, %arg5: memref<32x4xf32, #tpu.memory_space<vmem>>, %arg6: memref<1x64x4xf32, #tpu.memory_space<vmem>>, %arg7: memref<8x32xf32, #tpu.memory_space<vmem>>, %arg8: memref<64x32xf32, #tpu.memory_space<vmem>>) attributes {dimension_semantics = [#tpu.dimension_semantics<parallel>, #tpu.dimension_semantics<arbitrary>], iteration_bounds = array<i64: 1, 1>, scalar_prefetch = 0 : i64, scratch_operands = 2 : i64, tpu.core_type = #tpu.core_type<tc>, window_params = [{transform_indices = @transform_0, window_bounds = array<i64: 1, 64, 32>}, {transform_indices = @transform_1, window_bounds = array<i64: 1, 64, 4>}, {pipeline_mode = #tpu.pipeline_mode<synchronous>, transform_indices = @transform_2, window_bounds = array<i64: 32, 32>}, {pipeline_mode = #tpu.pipeline_mode<synchronous>, transform_indices = @transform_3, window_bounds = array<i64: 32, 4>}, {transform_indices = @transform_4, window_bounds = array<i64: 1, 64, 4>}]} {
    %c0_i32 = arith.constant 0 : i32
    %0 = arith.cmpi eq, %arg1, %c0_i32 : i32
    %1 = arith.extui %0 : i1 to i32
    %c0_i32_0 = arith.constant 0 : i32
    %2 = arith.cmpi ne, %1, %c0_i32_0 : i32
    scf.if %2 {
      %cst_57 = arith.constant 0.000000e+00 : f32
      %87 = vector.broadcast %cst_57 : f32 to vector<8x32xf32>
      %c0_58 = arith.constant 0 : index
      %c0_59 = arith.constant 0 : index
      %88 = vector.load %arg7[%c0_58, %c0_59] : memref<8x32xf32, #tpu.memory_space<vmem>>, vector<8x32xf32>
      tpu.vector_store %arg7[%c0_58, %c0_59], %87 {strides = array<i32>} : memref<8x32xf32, #tpu.memory_space<vmem>>, vector<8x32xf32>,
    } else {
    }
    %c0 = arith.constant 0 : index
    %c0_1 = arith.constant 0 : index
    %3 = vector.load %arg4[%c0, %c0_1] : memref<32x32xf32, #tpu.memory_space<vmem>>, vector<32x32xf32>
    %c0_2 = arith.constant 0 : index
    %c0_3 = arith.constant 0 : index
    %4 = vector.load %arg7[%c0_2, %c0_3] : memref<8x32xf32, #tpu.memory_space<vmem>>, vector<8x32xf32>
    %c0_i32_4 = arith.constant 0 : i32
    %c8_i32 = arith.constant 8 : i32
    %5 = arith.muli %c0_i32_4, %c8_i32 : i32
    %6 = tpu.assume_multiple %5, 8 : i32
    %cst = arith.constant dense<0.000000e+00> : vector<8x32xf32>
    %7 = tpu.matmul %4, %3, %cst {dimension_numbers = #tpu.dot_dimension_numbers<[1], [0], [0], [1], [0, 0, 1, 1], [], []>} : vector<8x32xf32>, vector<32x32xf32>, vector<8x32xf32> -> vector<8x32xf32>
    %c0_5 = arith.constant 0 : index
    %8 = arith.index_cast %6 : i32 to index
    %c0_6 = arith.constant 0 : index
    %9 = vector.load %arg2[%c0_5, %8, %c0_6] : memref<1x64x32xf32, #tpu.memory_space<vmem>>, vector<1x8x32xf32>
    %10 = vector.shape_cast %9 : vector<1x8x32xf32> to vector<8x32xf32>
    %11 = arith.addf %7, %10 : vector<8x32xf32>
    %12 = arith.index_cast %6 : i32 to index
    %c0_7 = arith.constant 0 : index
    %13 = vector.load %arg8[%12, %c0_7] : memref<64x32xf32, #tpu.memory_space<vmem>>, vector<8x32xf32>
    tpu.vector_store %arg8[%12, %c0_7], %11 {strides = array<i32>} : memref<64x32xf32, #tpu.memory_space<vmem>>, vector<8x32xf32>,
    %c1_i32 = arith.constant 1 : i32
    %c8_i32_8 = arith.constant 8 : i32
    %14 = arith.muli %c1_i32, %c8_i32_8 : i32
    %15 = tpu.assume_multiple %14, 8 : i32
    %cst_9 = arith.constant dense<0.000000e+00> : vector<8x32xf32>
    %16 = tpu.matmul %11, %3, %cst_9 {dimension_numbers = #tpu.dot_dimension_numbers<[1], [0], [0], [1], [0, 0, 1, 1], [], []>} : vector<8x32xf32>, vector<32x32xf32>, vector<8x32xf32> -> vector<8x32xf32>
    %c0_10 = arith.constant 0 : index
    %17 = arith.index_cast %15 : i32 to index
    %c0_11 = arith.constant 0 : index
    %18 = vector.load %arg2[%c0_10, %17, %c0_11] : memref<1x64x32xf32, #tpu.memory_space<vmem>>, vector<1x8x32xf32>
    %19 = vector.shape_cast %18 : vector<1x8x32xf32> to vector<8x32xf32>
    %20 = arith.addf %16, %19 : vector<8x32xf32>
    %21 = arith.index_cast %15 : i32 to index
    %c0_12 = arith.constant 0 : index
    %22 = vector.load %arg8[%21, %c0_12] : memref<64x32xf32, #tpu.memory_space<vmem>>, vector<8x32xf32>
    tpu.vector_store %arg8[%21, %c0_12], %20 {strides = array<i32>} : memref<64x32xf32, #tpu.memory_space<vmem>>, vector<8x32xf32>,
    %c2_i32 = arith.constant 2 : i32
    %c8_i32_13 = arith.constant 8 : i32
    %23 = arith.muli %c2_i32, %c8_i32_13 : i32
    %24 = tpu.assume_multiple %23, 8 : i32
    %cst_14 = arith.constant dense<0.000000e+00> : vector<8x32xf32>
    %25 = tpu.matmul %20, %3, %cst_14 {dimension_numbers = #tpu.dot_dimension_numbers<[1], [0], [0], [1], [0, 0, 1, 1], [], []>} : vector<8x32xf32>, vector<32x32xf32>, vector<8x32xf32> -> vector<8x32xf32>
    %c0_15 = arith.constant 0 : index
    %26 = arith.index_cast %24 : i32 to index
    %c0_16 = arith.constant 0 : index
    %27 = vector.load %arg2[%c0_15, %26, %c0_16] : memref<1x64x32xf32, #tpu.memory_space<vmem>>, vector<1x8x32xf32>
    %28 = vector.shape_cast %27 : vector<1x8x32xf32> to vector<8x32xf32>
    %29 = arith.addf %25, %28 : vector<8x32xf32>
    %30 = arith.index_cast %24 : i32 to index
    %c0_17 = arith.constant 0 : index
    %31 = vector.load %arg8[%30, %c0_17] : memref<64x32xf32, #tpu.memory_space<vmem>>, vector<8x32xf32>
    tpu.vector_store %arg8[%30, %c0_17], %29 {strides = array<i32>} : memref<64x32xf32, #tpu.memory_space<vmem>>, vector<8x32xf32>,
    %c3_i32 = arith.constant 3 : i32
    %c8_i32_18 = arith.constant 8 : i32
    %32 = arith.muli %c3_i32, %c8_i32_18 : i32
    %33 = tpu.assume_multiple %32, 8 : i32
    %cst_19 = arith.constant dense<0.000000e+00> : vector<8x32xf32>
    %34 = tpu.matmul %29, %3, %cst_19 {dimension_numbers = #tpu.dot_dimension_numbers<[1], [0], [0], [1], [0, 0, 1, 1], [], []>} : vector<8x32xf32>, vector<32x32xf32>, vector<8x32xf32> -> vector<8x32xf32>
    %c0_20 = arith.constant 0 : index
    %35 = arith.index_cast %33 : i32 to index
    %c0_21 = arith.constant 0 : index
    %36 = vector.load %arg2[%c0_20, %35, %c0_21] : memref<1x64x32xf32, #tpu.memory_space<vmem>>, vector<1x8x32xf32>
    %37 = vector.shape_cast %36 : vector<1x8x32xf32> to vector<8x32xf32>
    %38 = arith.addf %34, %37 : vector<8x32xf32>
    %39 = arith.index_cast %33 : i32 to index
    %c0_22 = arith.constant 0 : index
    %40 = vector.load %arg8[%39, %c0_22] : memref<64x32xf32, #tpu.memory_space<vmem>>, vector<8x32xf32>
    tpu.vector_store %arg8[%39, %c0_22], %38 {strides = array<i32>} : memref<64x32xf32, #tpu.memory_space<vmem>>, vector<8x32xf32>,
    %c4_i32 = arith.constant 4 : i32
    %c8_i32_23 = arith.constant 8 : i32
    %41 = arith.muli %c4_i32, %c8_i32_23 : i32
    %42 = tpu.assume_multiple %41, 8 : i32
    %cst_24 = arith.constant dense<0.000000e+00> : vector<8x32xf32>
    %43 = tpu.matmul %38, %3, %cst_24 {dimension_numbers = #tpu.dot_dimension_numbers<[1], [0], [0], [1], [0, 0, 1, 1], [], []>} : vector<8x32xf32>, vector<32x32xf32>, vector<8x32xf32> -> vector<8x32xf32>
    %c0_25 = arith.constant 0 : index
    %44 = arith.index_cast %42 : i32 to index
    %c0_26 = arith.constant 0 : index
    %45 = vector.load %arg2[%c0_25, %44, %c0_26] : memref<1x64x32xf32, #tpu.memory_space<vmem>>, vector<1x8x32xf32>
    %46 = vector.shape_cast %45 : vector<1x8x32xf32> to vector<8x32xf32>
    %47 = arith.addf %43, %46 : vector<8x32xf32>
    %48 = arith.index_cast %42 : i32 to index
    %c0_27 = arith.constant 0 : index
    %49 = vector.load %arg8[%48, %c0_27] : memref<64x32xf32, #tpu.memory_space<vmem>>, vector<8x32xf32>
    tpu.vector_store %arg8[%48, %c0_27], %47 {strides = array<i32>} : memref<64x32xf32, #tpu.memory_space<vmem>>, vector<8x32xf32>,
    %c5_i32 = arith.constant 5 : i32
    %c8_i32_28 = arith.constant 8 : i32
    %50 = arith.muli %c5_i32, %c8_i32_28 : i32
    %51 = tpu.assume_multiple %50, 8 : i32
    %cst_29 = arith.constant dense<0.000000e+00> : vector<8x32xf32>
    %52 = tpu.matmul %47, %3, %cst_29 {dimension_numbers = #tpu.dot_dimension_numbers<[1], [0], [0], [1], [0, 0, 1, 1], [], []>} : vector<8x32xf32>, vector<32x32xf32>, vector<8x32xf32> -> vector<8x32xf32>
    %c0_30 = arith.constant 0 : index
    %53 = arith.index_cast %51 : i32 to index
    %c0_31 = arith.constant 0 : index
    %54 = vector.load %arg2[%c0_30, %53, %c0_31] : memref<1x64x32xf32, #tpu.memory_space<vmem>>, vector<1x8x32xf32>
    %55 = vector.shape_cast %54 : vector<1x8x32xf32> to vector<8x32xf32>
    %56 = arith.addf %52, %55 : vector<8x32xf32>
    %57 = arith.index_cast %51 : i32 to index
    %c0_32 = arith.constant 0 : index
    %58 = vector.load %arg8[%57, %c0_32] : memref<64x32xf32, #tpu.memory_space<vmem>>, vector<8x32xf32>
    tpu.vector_store %arg8[%57, %c0_32], %56 {strides = array<i32>} : memref<64x32xf32, #tpu.memory_space<vmem>>, vector<8x32xf32>,
    %c6_i32 = arith.constant 6 : i32
    %c8_i32_33 = arith.constant 8 : i32
    %59 = arith.muli %c6_i32, %c8_i32_33 : i32
    %60 = tpu.assume_multiple %59, 8 : i32
    %cst_34 = arith.constant dense<0.000000e+00> : vector<8x32xf32>
    %61 = tpu.matmul %56, %3, %cst_34 {dimension_numbers = #tpu.dot_dimension_numbers<[1], [0], [0], [1], [0, 0, 1, 1], [], []>} : vector<8x32xf32>, vector<32x32xf32>, vector<8x32xf32> -> vector<8x32xf32>
    %c0_35 = arith.constant 0 : index
    %62 = arith.index_cast %60 : i32 to index
    %c0_36 = arith.constant 0 : index
    %63 = vector.load %arg2[%c0_35, %62, %c0_36] : memref<1x64x32xf32, #tpu.memory_space<vmem>>, vector<1x8x32xf32>
    %64 = vector.shape_cast %63 : vector<1x8x32xf32> to vector<8x32xf32>
    %65 = arith.addf %61, %64 : vector<8x32xf32>
    %66 = arith.index_cast %60 : i32 to index
    %c0_37 = arith.constant 0 : index
    %67 = vector.load %arg8[%66, %c0_37] : memref<64x32xf32, #tpu.memory_space<vmem>>, vector<8x32xf32>
    tpu.vector_store %arg8[%66, %c0_37], %65 {strides = array<i32>} : memref<64x32xf32, #tpu.memory_space<vmem>>, vector<8x32xf32>,
    %c7_i32 = arith.constant 7 : i32
    %c8_i32_38 = arith.constant 8 : i32
    %68 = arith.muli %c7_i32, %c8_i32_38 : i32
    %69 = tpu.assume_multiple %68, 8 : i32
    %cst_39 = arith.constant dense<0.000000e+00> : vector<8x32xf32>
    %70 = tpu.matmul %65, %3, %cst_39 {dimension_numbers = #tpu.dot_dimension_numbers<[1], [0], [0], [1], [0, 0, 1, 1], [], []>} : vector<8x32xf32>, vector<32x32xf32>, vector<8x32xf32> -> vector<8x32xf32>
    %c0_40 = arith.constant 0 : index
    %71 = arith.index_cast %69 : i32 to index
    %c0_41 = arith.constant 0 : index
    %72 = vector.load %arg2[%c0_40, %71, %c0_41] : memref<1x64x32xf32, #tpu.memory_space<vmem>>, vector<1x8x32xf32>
    %73 = vector.shape_cast %72 : vector<1x8x32xf32> to vector<8x32xf32>
    %74 = arith.addf %70, %73 : vector<8x32xf32>
    %75 = arith.index_cast %69 : i32 to index
    %c0_42 = arith.constant 0 : index
    %76 = vector.load %arg8[%75, %c0_42] : memref<64x32xf32, #tpu.memory_space<vmem>>, vector<8x32xf32>
    tpu.vector_store %arg8[%75, %c0_42], %74 {strides = array<i32>} : memref<64x32xf32, #tpu.memory_space<vmem>>, vector<8x32xf32>,
    %c8_i32_43 = arith.constant 8 : i32
    %c0_44 = arith.constant 0 : index
    %c0_45 = arith.constant 0 : index
    %77 = vector.load %arg7[%c0_44, %c0_45] : memref<8x32xf32, #tpu.memory_space<vmem>>, vector<8x32xf32>
    tpu.vector_store %arg7[%c0_44, %c0_45], %74 {strides = array<i32>} : memref<8x32xf32, #tpu.memory_space<vmem>>, vector<8x32xf32>,
    %c0_46 = arith.constant 0 : index
    %c0_47 = arith.constant 0 : index
    %78 = vector.load %arg8[%c0_46, %c0_47] : memref<64x32xf32, #tpu.memory_space<vmem>>, vector<64x32xf32>
    %c0_48 = arith.constant 0 : index
    %c0_49 = arith.constant 0 : index
    %79 = vector.load %arg5[%c0_48, %c0_49] : memref<32x4xf32, #tpu.memory_space<vmem>>, vector<32x4xf32>
    %cst_50 = arith.constant dense<0.000000e+00> : vector<64x4xf32>
    %80 = tpu.matmul %78, %79, %cst_50 {dimension_numbers = #tpu.dot_dimension_numbers<[1], [0], [0], [1], [0, 0, 1, 1], [], []>} : vector<64x32xf32>, vector<32x4xf32>, vector<64x4xf32> -> vector<64x4xf32>
    %c0_51 = arith.constant 0 : index
    %c0_52 = arith.constant 0 : index
    %c0_53 = arith.constant 0 : index
    %81 = vector.load %arg3[%c0_51, %c0_52, %c0_53] : memref<1x64x4xf32, #tpu.memory_space<vmem>>, vector<1x64x4xf32>
    %82 = vector.shape_cast %81 : vector<1x64x4xf32> to vector<64x4xf32>
    %83 = arith.addf %80, %82 : vector<64x4xf32>
    %c0_54 = arith.constant 0 : index
    %c0_55 = arith.constant 0 : index
    %c0_56 = arith.constant 0 : index
    %84 = vector.load %arg6[%c0_54, %c0_55, %c0_56] : memref<1x64x4xf32, #tpu.memory_space<vmem>>, vector<1x64x4xf32>
    %85 = vector.shape_cast %84 : vector<1x64x4xf32> to vector<64x4xf32>
    %86 = vector.shape_cast %83 : vector<64x4xf32> to vector<1x64x4xf32>
    tpu.vector_store %arg6[%c0_54, %c0_55, %c0_56], %86 {strides = array<i32>} : memref<1x64x4xf32, #tpu.memory_space<vmem>>, vector<1x64x4xf32>,
    return
  }
  func.func @transform_0(%arg0: i32, %arg1: i32) -> (i32, i32, i32) {
    %c0_i32 = arith.constant 0 : i32
    %c0_i32_0 = arith.constant 0 : i32
    return %arg0, %arg1, %c0_i32 : i32, i32, i32
  }
  func.func @transform_1(%arg0: i32, %arg1: i32) -> (i32, i32, i32) {
    %c0_i32 = arith.constant 0 : i32
    %c0_i32_0 = arith.constant 0 : i32
    return %arg0, %arg1, %c0_i32 : i32, i32, i32
  }
  func.func @transform_2(%arg0: i32, %arg1: i32) -> (i32, i32) {
    %c0_i32 = arith.constant 0 : i32
    %c0_i32_0 = arith.constant 0 : i32
    %c0_i32_1 = arith.constant 0 : i32
    return %c0_i32, %c0_i32_0 : i32, i32
  }
  func.func @transform_3(%arg0: i32, %arg1: i32) -> (i32, i32) {
    %c0_i32 = arith.constant 0 : i32
    %c0_i32_0 = arith.constant 0 : i32
    %c0_i32_1 = arith.constant 0 : i32
    return %c0_i32, %c0_i32_0 : i32, i32
  }
  func.func @transform_4(%arg0: i32, %arg1: i32) -> (i32, i32, i32) {
    %c0_i32 = arith.constant 0 : i32
    %c0_i32_0 = arith.constant 0 : i32
    return %arg0, %arg1, %c0_i32 : i32, i32, i32
  }
}

</mosaic_0001>

<llo_original>
// kernel: lssm_forward.1
$region0: #{lssm_forward.1}
  #allocation0 [shape = 'u32[]', space=smem, size = 0x4, offset = 0x4, fixed_abs, tag = 'smem constant byte address 0x4 - core index']
  #allocation1 [shape = 'u32[144,128]{1,0:T(1,128)}', space=vmem, size = 0x12000, scoped, tag = 'internal scratch']
  #allocation2 [shape = 'f32[8,32]{1,0:T(8,128)}', space=vmem, size = 0x1000, scoped, tag = 'scratch operand']
  #allocation3 [shape = 'f32[64,32]{1,0:T(8,128)}', space=vmem, size = 0x8000, scoped, tag = 'scratch operand']
  %s0 = inlined_call_operand.vmem [shape: f32[1,64,32], index: 0, kind: input, shape index: {}]
  %s1 = inlined_call_operand.vmem [shape: f32[1,64,4], index: 1, kind: input, shape index: {}]
  %s2 = inlined_call_operand.vmem [shape: f32[32,32], index: 2, kind: input, shape index: {}]
  %s3 = inlined_call_operand.vmem [shape: f32[32,4], index: 3, kind: input, shape index: {}]
  %s4 = inlined_call_operand.vmem [shape: f32[1,64,4], index: 4, kind: output, shape index: {}]
  %s5 = sld [smem:[#allocation0]]
  $region30: #{lssm_forward.1} parent=0
    _
  %s7 = ssub.s32 1, %s5
  %s8 = scalar_select 0, %s7, %s5
  // Predicated region
  $region2: #{lssm_forward.1} parent=0 // pred_check
    _
  $region3: #{lssm_forward.1} parent=0 // pred_check_branch
    %10 = sbr.rel (0) target = $region5
  $region4: #{lssm_forward.1} parent=0 // pred_region
    _
  $region5: #{lssm_forward.1} parent=0 // pred_fallthru
    _
  // Predicated region
  $region6: #{lssm_forward.1} parent=0 // pred_check
    _
  $region7: #{lssm_forward.1} parent=0 // pred_check_branch
    %12 = sbr.rel (0) target = $region9
  $region8: #{lssm_forward.1} parent=0 // pred_region
    _
  $region9: #{lssm_forward.1} parent=0 // pred_fallthru
    _
  // Predicated region
  $region10: #{lssm_forward.1} parent=0 // pred_check
    _
  $region11: #{lssm_forward.1} parent=0 // pred_check_branch
    %14 = sbr.rel (0) target = $region13
  $region12: #{lssm_forward.1} parent=0 // pred_region
    _
  $region13: #{lssm_forward.1} parent=0 // pred_fallthru
    _
  // Predicated region
  $region14: #{lssm_forward.1} parent=0 // pred_check
    _
  $region15: #{lssm_forward.1} parent=0 // pred_check_branch
    %16 = sbr.rel (0) target = $region17
  $region16: #{lssm_forward.1} parent=0 // pred_region
    _
  $region17: #{lssm_forward.1} parent=0 // pred_fallthru
    _
  %p17 = scmp.eq.s32.totalorder 0, 0
  // Predicated region
  $region18: #{lssm_forward.1} parent=0 // pred_check
    %p18 = pneg %p17
  $region19: #{lssm_forward.1} parent=0 // pred_check_branch
    %20 = sbr.rel (%p18) target = $region21
  $region20: #{lssm_forward.1} parent=0 // pred_region
    %vm21 = vcmask 261120
    %22 = vst.msk [vmem:[#allocation2] sm:$0xff] %vm21, 0.0
  $region21: #{lssm_forward.1} parent=0 // pred_fallthru
    _
  %v23 = vld [vmem:[%s2] sm:$0xff]
  %v24 = vld [vmem:[%s2 + $0x8] sm:$0xff]
  %v25 = vld [vmem:[%s2 + $0x10] sm:$0xff]
  %v26 = vld [vmem:[%s2 + $0x18] sm:$0xff]
  %v27 = vld [vmem:[#allocation2] sm:$0xff]
  %v28 = vld [vmem:[%s0] sm:$0xff]
  %vm29 = vcmask 261120
  %v31 = vsel %vm29, %v27, 0
  %33 = vmatprep.subr.mxu0 0.0
  %34 = vmatpush1.msra.mxu0 %v23
  %35 = vmatprep.subr.mxu0 0.0
  %36 = vmatpush1.msra.mxu0 %v24
  %37 = vmatprep.subr.mxu0 0.0
  %38 = vmatpush1.msra.mxu0 %v25
  %39 = vmatprep.subr.mxu0 0.0
  %40 = vmatpush1.msra.mxu0 %v26
  %41 = vmatprep.subr.mxu0 0.0
  %42 = vmatpush1.msra.mxu0 0.0
  %43 = vmatprep.subr.mxu0 0.0
  %44 = vmatpush1.msra.mxu0 0.0
  %45 = vmatprep.subr.mxu0 0.0
  %46 = vmatpush1.msra.mxu0 0.0
  %47 = vmatprep.subr.mxu0 0.0
  %48 = vmatpush1.msra.mxu0 0.0
  %49 = vmatprep.subr.mxu0 0.0
  %50 = vmatpush1.msra.mxu0 0.0
  %51 = vmatprep.subr.mxu0 0.0
  %52 = vmatpush1.msra.mxu0 0.0
  %53 = vmatprep.subr.mxu0 0.0
  %54 = vmatpush1.msra.mxu0 0.0
  %55 = vmatprep.subr.mxu0 0.0
  %56 = vmatpush1.msra.mxu0 0.0
  %57 = vmatprep.subr.mxu0 0.0
  %58 = vmatpush1.msra.mxu0 0.0
  %59 = vmatprep.subr.mxu0 0.0
  %60 = vmatpush1.msra.mxu0 0.0
  %61 = vmatprep.subr.mxu0 0.0
  %62 = vmatpush1.msra.mxu0 0.0
  %63 = vmatprep.subr.mxu0 0.0
  %64 = vmatpush1.msra.mxu0 0.0
  %65 = vmatprep.subr.mxu0 0.0
  %66 = vmatpush1.msra.mxu0 0.0
  %67 = vmatprep.subr.mxu0 0.0
  %68 = vmatpush1.msra.mxu0 0.0
  %69 = vmatprep.subr.mxu0 0.0
  %70 = vmatpush1.msra.mxu0 0.0
  %71 = vmatprep.subr.mxu0 0.0
  %72 = vmatpush1.msra.mxu0 0.0
  %73 = vmatprep.subr.mxu0 0.0
  %74 = vmatpush1.msra.mxu0 0.0
  %75 = vmatprep.subr.mxu0 0.0
  %76 = vmatpush1.msra.mxu0 0.0
  %77 = vmatprep.subr.mxu0 0.0
  %78 = vmatpush1.msra.mxu0 0.0
  %79 = vmatprep.subr.mxu0 0.0
  %80 = vmatpush1.msra.mxu0 0.0
  %81 = vmatprep.subr.mxu0 0.0
  %82 = vmatpush1.msra.mxu0 0.0
  %83 = vmatprep.subr.mxu0 0.0
  %84 = vmatpush1.msra.mxu0 0.0
  %85 = vmatprep.subr.mxu0 0.0
  %86 = vmatpush1.msra.mxu0 0.0
  %87 = vmatprep.subr.mxu0 0.0
  %88 = vmatpush1.msra.mxu0 0.0
  %89 = vmatprep.subr.mxu0 0.0
  %90 = vmatpush1.msra.mxu0 0.0
  %91 = vmatprep.subr.mxu0 0.0
  %92 = vmatpush1.msra.mxu0 0.0
  %93 = vmatprep.subr.mxu0 0.0
  %94 = vmatpush1.msra.mxu0 0.0
  %95 = vmatprep.subr.mxu0 0.0
  %96 = vmatpush1.msra.mxu0 0.0
  %97 = vmatprep.mubr.f32.mxu0 0.0
  %98 = vmatmul.mubr.f32.gmra.mrb[0].mxu0 %v31
  %v99 = vpop.f32.mrb[0].mxu0
  %v100 = vadd.f32 %v28, %v99
  %v101 = vpop.f32.mrb[0].mxu0
  %102 = vdwg.mxu0
  %103 = vst.msk [vmem:[#allocation3] sm:$0xff] %vm29, %v100
  %s104 = scalar_lea.vmem %s0, 8
  %v105 = vld [vmem:[%s104] sm:$0xff]
  %v107 = vsel %vm29, %v100, 0
  %109 = vmatprep.subr.mxu0 0.0
  %110 = vmatpush1.msra.mxu0 %v23
  %111 = vmatprep.subr.mxu0 0.0
  %112 = vmatpush1.msra.mxu0 %v24
  %113 = vmatprep.subr.mxu0 0.0
  %114 = vmatpush1.msra.mxu0 %v25
  %115 = vmatprep.subr.mxu0 0.0
  %116 = vmatpush1.msra.mxu0 %v26
  %117 = vmatprep.subr.mxu0 0.0
  %118 = vmatpush1.msra.mxu0 0.0
  %119 = vmatprep.subr.mxu0 0.0
  %120 = vmatpush1.msra.mxu0 0.0
  %121 = vmatprep.subr.mxu0 0.0
  %122 = vmatpush1.msra.mxu0 0.0
  %123 = vmatprep.subr.mxu0 0.0
  %124 = vmatpush1.msra.mxu0 0.0
  %125 = vmatprep.subr.mxu0 0.0
  %126 = vmatpush1.msra.mxu0 0.0
  %127 = vmatprep.subr.mxu0 0.0
  %128 = vmatpush1.msra.mxu0 0.0
  %129 = vmatprep.subr.mxu0 0.0
  %130 = vmatpush1.msra.mxu0 0.0
  %131 = vmatprep.subr.mxu0 0.0
  %132 = vmatpush1.msra.mxu0 0.0
  %133 = vmatprep.subr.mxu0 0.0
  %134 = vmatpush1.msra.mxu0 0.0
  %135 = vmatprep.subr.mxu0 0.0
  %136 = vmatpush1.msra.mxu0 0.0
  %137 = vmatprep.subr.mxu0 0.0
  %138 = vmatpush1.msra.mxu0 0.0
  %139 = vmatprep.subr.mxu0 0.0
  %140 = vmatpush1.msra.mxu0 0.0
  %141 = vmatprep.subr.mxu0 0.0
  %142 = vmatpush1.msra.mxu0 0.0
  %143 = vmatprep.subr.mxu0 0.0
  %144 = vmatpush1.msra.mxu0 0.0
  %145 = vmatprep.subr.mxu0 0.0
  %146 = vmatpush1.msra.mxu0 0.0
  %147 = vmatprep.subr.mxu0 0.0
  %148 = vmatpush1.msra.mxu0 0.0
  %149 = vmatprep.subr.mxu0 0.0
  %150 = vmatpush1.msra.mxu0 0.0
  %151 = vmatprep.subr.mxu0 0.0
  %152 = vmatpush1.msra.mxu0 0.0
  %153 = vmatprep.subr.mxu0 0.0
  %154 = vmatpush1.msra.mxu0 0.0
  %155 = vmatprep.subr.mxu0 0.0
  %156 = vmatpush1.msra.mxu0 0.0
  %157 = vmatprep.subr.mxu0 0.0
  %158 = vmatpush1.msra.mxu0 0.0
  %159 = vmatprep.subr.mxu0 0.0
  %160 = vmatpush1.msra.mxu0 0.0
  %161 = vmatprep.subr.mxu0 0.0
  %162 = vmatpush1.msra.mxu0 0.0
  %163 = vmatprep.subr.mxu0 0.0
  %164 = vmatpush1.msra.mxu0 0.0
  %165 = vmatprep.subr.mxu0 0.0
  %166 = vmatpush1.msra.mxu0 0.0
  %167 = vmatprep.subr.mxu0 0.0
  %168 = vmatpush1.msra.mxu0 0.0
  %169 = vmatprep.subr.mxu0 0.0
  %170 = vmatpush1.msra.mxu0 0.0
  %171 = vmatprep.subr.mxu0 0.0
  %172 = vmatpush1.msra.mxu0 0.0
  %173 = vmatprep.mubr.f32.mxu0 0.0
  %174 = vmatmul.mubr.f32.gmra.mrb[0].mxu0 %v107
  %v175 = vpop.f32.mrb[0].mxu0
  %v176 = vadd.f32 %v105, %v175
  %v177 = vpop.f32.mrb[0].mxu0
  %178 = vdwg.mxu0
  %s179 = scalar_lea.vmem [#allocation3], 8
  %180 = vst.msk [vmem:[%s179] sm:$0xff] %vm29, %v176
  %s181 = scalar_lea.vmem %s0, 16
  %v182 = vld [vmem:[%s181] sm:$0xff]
  %v184 = vsel %vm29, %v176, 0
  %186 = vmatprep.subr.mxu0 0.0
  %187 = vmatpush1.msra.mxu0 %v23
  %188 = vmatprep.subr.mxu0 0.0
  %189 = vmatpush1.msra.mxu0 %v24
  %190 = vmatprep.subr.mxu0 0.0
  %191 = vmatpush1.msra.mxu0 %v25
  %192 = vmatprep.subr.mxu0 0.0
  %193 = vmatpush1.msra.mxu0 %v26
  %194 = vmatprep.subr.mxu0 0.0
  %195 = vmatpush1.msra.mxu0 0.0
  %196 = vmatprep.subr.mxu0 0.0
  %197 = vmatpush1.msra.mxu0 0.0
  %198 = vmatprep.subr.mxu0 0.0
  %199 = vmatpush1.msra.mxu0 0.0
  %200 = vmatprep.subr.mxu0 0.0
  %201 = vmatpush1.msra.mxu0 0.0
  %202 = vmatprep.subr.mxu0 0.0
  %203 = vmatpush1.msra.mxu0 0.0
  %204 = vmatprep.subr.mxu0 0.0
  %205 = vmatpush1.msra.mxu0 0.0
  %206 = vmatprep.subr.mxu0 0.0
  %207 = vmatpush1.msra.mxu0 0.0
  %208 = vmatprep.subr.mxu0 0.0
  %209 = vmatpush1.msra.mxu0 0.0
  %210 = vmatprep.subr.mxu0 0.0
  %211 = vmatpush1.msra.mxu0 0.0
  %212 = vmatprep.subr.mxu0 0.0
  %213 = vmatpush1.msra.mxu0 0.0
  %214 = vmatprep.subr.mxu0 0.0
  %215 = vmatpush1.msra.mxu0 0.0
  %216 = vmatprep.subr.mxu0 0.0
  %217 = vmatpush1.msra.mxu0 0.0
  %218 = vmatprep.subr.mxu0 0.0
  %219 = vmatpush1.msra.mxu0 0.0
  %220 = vmatprep.subr.mxu0 0.0
  %221 = vmatpush1.msra.mxu0 0.0
  %222 = vmatprep.subr.mxu0 0.0
  %223 = vmatpush1.msra.mxu0 0.0
  %224 = vmatprep.subr.mxu0 0.0
  %225 = vmatpush1.msra.mxu0 0.0
  %226 = vmatprep.subr.mxu0 0.0
  %227 = vmatpush1.msra.mxu0 0.0
  %228 = vmatprep.subr.mxu0 0.0
  %229 = vmatpush1.msra.mxu0 0.0
  %230 = vmatprep.subr.mxu0 0.0
  %231 = vmatpush1.msra.mxu0 0.0
  %232 = vmatprep.subr.mxu0 0.0
  %233 = vmatpush1.msra.mxu0 0.0
  %234 = vmatprep.subr.mxu0 0.0
  %235 = vmatpush1.msra.mxu0 0.0
  %236 = vmatprep.subr.mxu0 0.0
  %237 = vmatpush1.msra.mxu0 0.0
  %238 = vmatprep.subr.mxu0 0.0
  %239 = vmatpush1.msra.mxu0 0.0
  %240 = vmatprep.subr.mxu0 0.0
  %241 = vmatpush1.msra.mxu0 0.0
  %242 = vmatprep.subr.mxu0 0.0
  %243 = vmatpush1.msra.mxu0 0.0
  %244 = vmatprep.subr.mxu0 0.0
  %245 = vmatpush1.msra.mxu0 0.0
  %246 = vmatprep.subr.mxu0 0.0
  %247 = vmatpush1.msra.mxu0 0.0
  %248 = vmatprep.subr.mxu0 0.0
  %249 = vmatpush1.msra.mxu0 0.0
  %250 = vmatprep.mubr.f32.mxu0 0.0
  %251 = vmatmul.mubr.f32.gmra.mrb[0].mxu0 %v184
  %v252 = vpop.f32.mrb[0].mxu0
  %v253 = vadd.f32 %v182, %v252
  %v254 = vpop.f32.mrb[0].mxu0
  %255 = vdwg.mxu0
  %s256 = scalar_lea.vmem [#allocation3], 16
  %257 = vst.msk [vmem:[%s256] sm:$0xff] %vm29, %v253
  %s258 = scalar_lea.vmem %s0, 24
  %v259 = vld [vmem:[%s258] sm:$0xff]
  %v261 = vsel %vm29, %v253, 0
  %263 = vmatprep.subr.mxu0 0.0
  %264 = vmatpush1.msra.mxu0 %v23
  %265 = vmatprep.subr.mxu0 0.0
  %266 = vmatpush1.msra.mxu0 %v24
  %267 = vmatprep.subr.mxu0 0.0
  %268 = vmatpush1.msra.mxu0 %v25
  %269 = vmatprep.subr.mxu0 0.0
  %270 = vmatpush1.msra.mxu0 %v26
  %271 = vmatprep.subr.mxu0 0.0
  %272 = vmatpush1.msra.mxu0 0.0
  %273 = vmatprep.subr.mxu0 0.0
  %274 = vmatpush1.msra.mxu0 0.0
  %275 = vmatprep.subr.mxu0 0.0
  %276 = vmatpush1.msra.mxu0 0.0
  %277 = vmatprep.subr.mxu0 0.0
  %278 = vmatpush1.msra.mxu0 0.0
  %279 = vmatprep.subr.mxu0 0.0
  %280 = vmatpush1.msra.mxu0 0.0
  %281 = vmatprep.subr.mxu0 0.0
  %282 = vmatpush1.msra.mxu0 0.0
  %283 = vmatprep.subr.mxu0 0.0
  %284 = vmatpush1.msra.mxu0 0.0
  %285 = vmatprep.subr.mxu0 0.0
  %286 = vmatpush1.msra.mxu0 0.0
  %287 = vmatprep.subr.mxu0 0.0
  %288 = vmatpush1.msra.mxu0 0.0
  %289 = vmatprep.subr.mxu0 0.0
  %290 = vmatpush1.msra.mxu0 0.0
  %291 = vmatprep.subr.mxu0 0.0
  %292 = vmatpush1.msra.mxu0 0.0
  %293 = vmatprep.subr.mxu0 0.0
  %294 = vmatpush1.msra.mxu0 0.0
  %295 = vmatprep.subr.mxu0 0.0
  %296 = vmatpush1.msra.mxu0 0.0
  %297 = vmatprep.subr.mxu0 0.0
  %298 = vmatpush1.msra.mxu0 0.0
  %299 = vmatprep.subr.mxu0 0.0
  %300 = vmatpush1.msra.mxu0 0.0
  %301 = vmatprep.subr.mxu0 0.0
  %302 = vmatpush1.msra.mxu0 0.0
  %303 = vmatprep.subr.mxu0 0.0
  %304 = vmatpush1.msra.mxu0 0.0
  %305 = vmatprep.subr.mxu0 0.0
  %306 = vmatpush1.msra.mxu0 0.0
  %307 = vmatprep.subr.mxu0 0.0
  %308 = vmatpush1.msra.mxu0 0.0
  %309 = vmatprep.subr.mxu0 0.0
  %310 = vmatpush1.msra.mxu0 0.0
  %311 = vmatprep.subr.mxu0 0.0
  %312 = vmatpush1.msra.mxu0 0.0
  %313 = vmatprep.subr.mxu0 0.0
  %314 = vmatpush1.msra.mxu0 0.0
  %315 = vmatprep.subr.mxu0 0.0
  %316 = vmatpush1.msra.mxu0 0.0
  %317 = vmatprep.subr.mxu0 0.0
  %318 = vmatpush1.msra.mxu0 0.0
  %319 = vmatprep.subr.mxu0 0.0
  %320 = vmatpush1.msra.mxu0 0.0
  %321 = vmatprep.subr.mxu0 0.0
  %322 = vmatpush1.msra.mxu0 0.0
  %323 = vmatprep.subr.mxu0 0.0
  %324 = vmatpush1.msra.mxu0 0.0
  %325 = vmatprep.subr.mxu0 0.0
  %326 = vmatpush1.msra.mxu0 0.0
  %327 = vmatprep.mubr.f32.mxu0 0.0
  %328 = vmatmul.mubr.f32.gmra.mrb[0].mxu0 %v261
  %v329 = vpop.f32.mrb[0].mxu0
  %v330 = vadd.f32 %v259, %v329
  %v331 = vpop.f32.mrb[0].mxu0
  %332 = vdwg.mxu0
  %s333 = scalar_lea.vmem [#allocation3], 24
  %334 = vst.msk [vmem:[%s333] sm:$0xff] %vm29, %v330
  %s335 = scalar_lea.vmem %s0, 32
  %v336 = vld [vmem:[%s335] sm:$0xff]
  %v338 = vsel %vm29, %v330, 0
  %340 = vmatprep.subr.mxu0 0.0
  %341 = vmatpush1.msra.mxu0 %v23
  %342 = vmatprep.subr.mxu0 0.0
  %343 = vmatpush1.msra.mxu0 %v24
  %344 = vmatprep.subr.mxu0 0.0
  %345 = vmatpush1.msra.mxu0 %v25
  %346 = vmatprep.subr.mxu0 0.0
  %347 = vmatpush1.msra.mxu0 %v26
  %348 = vmatprep.subr.mxu0 0.0
  %349 = vmatpush1.msra.mxu0 0.0
  %350 = vmatprep.subr.mxu0 0.0
  %351 = vmatpush1.msra.mxu0 0.0
  %352 = vmatprep.subr.mxu0 0.0
  %353 = vmatpush1.msra.mxu0 0.0
  %354 = vmatprep.subr.mxu0 0.0
  %355 = vmatpush1.msra.mxu0 0.0
  %356 = vmatprep.subr.mxu0 0.0
  %357 = vmatpush1.msra.mxu0 0.0
  %358 = vmatprep.subr.mxu0 0.0
  %359 = vmatpush1.msra.mxu0 0.0
  %360 = vmatprep.subr.mxu0 0.0
  %361 = vmatpush1.msra.mxu0 0.0
  %362 = vmatprep.subr.mxu0 0.0
  %363 = vmatpush1.msra.mxu0 0.0
  %364 = vmatprep.subr.mxu0 0.0
  %365 = vmatpush1.msra.mxu0 0.0
  %366 = vmatprep.subr.mxu0 0.0
  %367 = vmatpush1.msra.mxu0 0.0
  %368 = vmatprep.subr.mxu0 0.0
  %369 = vmatpush1.msra.mxu0 0.0
  %370 = vmatprep.subr.mxu0 0.0
  %371 = vmatpush1.msra.mxu0 0.0
  %372 = vmatprep.subr.mxu0 0.0
  %373 = vmatpush1.msra.mxu0 0.0
  %374 = vmatprep.subr.mxu0 0.0
  %375 = vmatpush1.msra.mxu0 0.0
  %376 = vmatprep.subr.mxu0 0.0
  %377 = vmatpush1.msra.mxu0 0.0
  %378 = vmatprep.subr.mxu0 0.0
  %379 = vmatpush1.msra.mxu0 0.0
  %380 = vmatprep.subr.mxu0 0.0
  %381 = vmatpush1.msra.mxu0 0.0
  %382 = vmatprep.subr.mxu0 0.0
  %383 = vmatpush1.msra.mxu0 0.0
  %384 = vmatprep.subr.mxu0 0.0
  %385 = vmatpush1.msra.mxu0 0.0
  %386 = vmatprep.subr.mxu0 0.0
  %387 = vmatpush1.msra.mxu0 0.0
  %388 = vmatprep.subr.mxu0 0.0
  %389 = vmatpush1.msra.mxu0 0.0
  %390 = vmatprep.subr.mxu0 0.0
  %391 = vmatpush1.msra.mxu0 0.0
  %392 = vmatprep.subr.mxu0 0.0
  %393 = vmatpush1.msra.mxu0 0.0
  %394 = vmatprep.subr.mxu0 0.0
  %395 = vmatpush1.msra.mxu0 0.0
  %396 = vmatprep.subr.mxu0 0.0
  %397 = vmatpush1.msra.mxu0 0.0
  %398 = vmatprep.subr.mxu0 0.0
  %399 = vmatpush1.msra.mxu0 0.0
  %400 = vmatprep.subr.mxu0 0.0
  %401 = vmatpush1.msra.mxu0 0.0
  %402 = vmatprep.subr.mxu0 0.0
  %403 = vmatpush1.msra.mxu0 0.0
  %404 = vmatprep.mubr.f32.mxu0 0.0
  %405 = vmatmul.mubr.f32.gmra.mrb[0].mxu0 %v338
  %v406 = vpop.f32.mrb[0].mxu0
  %v407 = vadd.f32 %v336, %v406
  %v408 = vpop.f32.mrb[0].mxu0
  %409 = vdwg.mxu0
  %s410 = scalar_lea.vmem [#allocation3], 32
  %411 = vst.msk [vmem:[%s410] sm:$0xff] %vm29, %v407
  %s412 = scalar_lea.vmem %s0, 40
  %v413 = vld [vmem:[%s412] sm:$0xff]
  %v415 = vsel %vm29, %v407, 0
  %417 = vmatprep.subr.mxu0 0.0
  %418 = vmatpush1.msra.mxu0 %v23
  %419 = vmatprep.subr.mxu0 0.0
  %420 = vmatpush1.msra.mxu0 %v24
  %421 = vmatprep.subr.mxu0 0.0
  %422 = vmatpush1.msra.mxu0 %v25
  %423 = vmatprep.subr.mxu0 0.0
  %424 = vmatpush1.msra.mxu0 %v26
  %425 = vmatprep.subr.mxu0 0.0
  %426 = vmatpush1.msra.mxu0 0.0
  %427 = vmatprep.subr.mxu0 0.0
  %428 = vmatpush1.msra.mxu0 0.0
  %429 = vmatprep.subr.mxu0 0.0
  %430 = vmatpush1.msra.mxu0 0.0
  %431 = vmatprep.subr.mxu0 0.0
  %432 = vmatpush1.msra.mxu0 0.0
  %433 = vmatprep.subr.mxu0 0.0
  %434 = vmatpush1.msra.mxu0 0.0
  %435 = vmatprep.subr.mxu0 0.0
  %436 = vmatpush1.msra.mxu0 0.0
  %437 = vmatprep.subr.mxu0 0.0
  %438 = vmatpush1.msra.mxu0 0.0
  %439 = vmatprep.subr.mxu0 0.0
  %440 = vmatpush1.msra.mxu0 0.0
  %441 = vmatprep.subr.mxu0 0.0
  %442 = vmatpush1.msra.mxu0 0.0
  %443 = vmatprep.subr.mxu0 0.0
  %444 = vmatpush1.msra.mxu0 0.0
  %445 = vmatprep.subr.mxu0 0.0
  %446 = vmatpush1.msra.mxu0 0.0
  %447 = vmatprep.subr.mxu0 0.0
  %448 = vmatpush1.msra.mxu0 0.0
  %449 = vmatprep.subr.mxu0 0.0
  %450 = vmatpush1.msra.mxu0 0.0
  %451 = vmatprep.subr.mxu0 0.0
  %452 = vmatpush1.msra.mxu0 0.0
  %453 = vmatprep.subr.mxu0 0.0
  %454 = vmatpush1.msra.mxu0 0.0
  %455 = vmatprep.subr.mxu0 0.0
  %456 = vmatpush1.msra.mxu0 0.0
  %457 = vmatprep.subr.mxu0 0.0
  %458 = vmatpush1.msra.mxu0 0.0
  %459 = vmatprep.subr.mxu0 0.0
  %460 = vmatpush1.msra.mxu0 0.0
  %461 = vmatprep.subr.mxu0 0.0
  %462 = vmatpush1.msra.mxu0 0.0
  %463 = vmatprep.subr.mxu0 0.0
  %464 = vmatpush1.msra.mxu0 0.0
  %465 = vmatprep.subr.mxu0 0.0
  %466 = vmatpush1.msra.mxu0 0.0
  %467 = vmatprep.subr.mxu0 0.0
  %468 = vmatpush1.msra.mxu0 0.0
  %469 = vmatprep.subr.mxu0 0.0
  %470 = vmatpush1.msra.mxu0 0.0
  %471 = vmatprep.subr.mxu0 0.0
  %472 = vmatpush1.msra.mxu0 0.0
  %473 = vmatprep.subr.mxu0 0.0
  %474 = vmatpush1.msra.mxu0 0.0
  %475 = vmatprep.subr.mxu0 0.0
  %476 = vmatpush1.msra.mxu0 0.0
  %477 = vmatprep.subr.mxu0 0.0
  %478 = vmatpush1.msra.mxu0 0.0
  %479 = vmatprep.subr.mxu0 0.0
  %480 = vmatpush1.msra.mxu0 0.0
  %481 = vmatprep.mubr.f32.mxu0 0.0
  %482 = vmatmul.mubr.f32.gmra.mrb[0].mxu0 %v415
  %v483 = vpop.f32.mrb[0].mxu0
  %v484 = vadd.f32 %v413, %v483
  %v485 = vpop.f32.mrb[0].mxu0
  %486 = vdwg.mxu0
  %s487 = scalar_lea.vmem [#allocation3], 40
  %488 = vst.msk [vmem:[%s487] sm:$0xff] %vm29, %v484
  %s489 = scalar_lea.vmem %s0, 48
  %v490 = vld [vmem:[%s489] sm:$0xff]
  %v492 = vsel %vm29, %v484, 0
  %494 = vmatprep.subr.mxu0 0.0
  %495 = vmatpush1.msra.mxu0 %v23
  %496 = vmatprep.subr.mxu0 0.0
  %497 = vmatpush1.msra.mxu0 %v24
  %498 = vmatprep.subr.mxu0 0.0
  %499 = vmatpush1.msra.mxu0 %v25
  %500 = vmatprep.subr.mxu0 0.0
  %501 = vmatpush1.msra.mxu0 %v26
  %502 = vmatprep.subr.mxu0 0.0
  %503 = vmatpush1.msra.mxu0 0.0
  %504 = vmatprep.subr.mxu0 0.0
  %505 = vmatpush1.msra.mxu0 0.0
  %506 = vmatprep.subr.mxu0 0.0
  %507 = vmatpush1.msra.mxu0 0.0
  %508 = vmatprep.subr.mxu0 0.0
  %509 = vmatpush1.msra.mxu0 0.0
  %510 = vmatprep.subr.mxu0 0.0
  %511 = vmatpush1.msra.mxu0 0.0
  %512 = vmatprep.subr.mxu0 0.0
  %513 = vmatpush1.msra.mxu0 0.0
  %514 = vmatprep.subr.mxu0 0.0
  %515 = vmatpush1.msra.mxu0 0.0
  %516 = vmatprep.subr.mxu0 0.0
  %517 = vmatpush1.msra.mxu0 0.0
  %518 = vmatprep.subr.mxu0 0.0
  %519 = vmatpush1.msra.mxu0 0.0
  %520 = vmatprep.subr.mxu0 0.0
  %521 = vmatpush1.msra.mxu0 0.0
  %522 = vmatprep.subr.mxu0 0.0
  %523 = vmatpush1.msra.mxu0 0.0
  %524 = vmatprep.subr.mxu0 0.0
  %525 = vmatpush1.msra.mxu0 0.0
  %526 = vmatprep.subr.mxu0 0.0
  %527 = vmatpush1.msra.mxu0 0.0
  %528 = vmatprep.subr.mxu0 0.0
  %529 = vmatpush1.msra.mxu0 0.0
  %530 = vmatprep.subr.mxu0 0.0
  %531 = vmatpush1.msra.mxu0 0.0
  %532 = vmatprep.subr.mxu0 0.0
  %533 = vmatpush1.msra.mxu0 0.0
  %534 = vmatprep.subr.mxu0 0.0
  %535 = vmatpush1.msra.mxu0 0.0
  %536 = vmatprep.subr.mxu0 0.0
  %537 = vmatpush1.msra.mxu0 0.0
  %538 = vmatprep.subr.mxu0 0.0
  %539 = vmatpush1.msra.mxu0 0.0
  %540 = vmatprep.subr.mxu0 0.0
  %541 = vmatpush1.msra.mxu0 0.0
  %542 = vmatprep.subr.mxu0 0.0
  %543 = vmatpush1.msra.mxu0 0.0
  %544 = vmatprep.subr.mxu0 0.0
  %545 = vmatpush1.msra.mxu0 0.0
  %546 = vmatprep.subr.mxu0 0.0
  %547 = vmatpush1.msra.mxu0 0.0
  %548 = vmatprep.subr.mxu0 0.0
  %549 = vmatpush1.msra.mxu0 0.0
  %550 = vmatprep.subr.mxu0 0.0
  %551 = vmatpush1.msra.mxu0 0.0
  %552 = vmatprep.subr.mxu0 0.0
  %553 = vmatpush1.msra.mxu0 0.0
  %554 = vmatprep.subr.mxu0 0.0
  %555 = vmatpush1.msra.mxu0 0.0
  %556 = vmatprep.subr.mxu0 0.0
  %557 = vmatpush1.msra.mxu0 0.0
  %558 = vmatprep.mubr.f32.mxu0 0.0
  %559 = vmatmul.mubr.f32.gmra.mrb[0].mxu0 %v492
  %v560 = vpop.f32.mrb[0].mxu0
  %v561 = vadd.f32 %v490, %v560
  %v562 = vpop.f32.mrb[0].mxu0
  %563 = vdwg.mxu0
  %s564 = scalar_lea.vmem [#allocation3], 48
  %565 = vst.msk [vmem:[%s564] sm:$0xff] %vm29, %v561
  %s566 = scalar_lea.vmem %s0, 56
  %v567 = vld [vmem:[%s566] sm:$0xff]
  %v569 = vsel %vm29, %v561, 0
  %571 = vmatprep.subr.mxu0 0.0
  %572 = vmatpush1.msra.mxu0 %v23
  %573 = vmatprep.subr.mxu0 0.0
  %574 = vmatpush1.msra.mxu0 %v24
  %575 = vmatprep.subr.mxu0 0.0
  %576 = vmatpush1.msra.mxu0 %v25
  %577 = vmatprep.subr.mxu0 0.0
  %578 = vmatpush1.msra.mxu0 %v26
  %579 = vmatprep.subr.mxu0 0.0
  %580 = vmatpush1.msra.mxu0 0.0
  %581 = vmatprep.subr.mxu0 0.0
  %582 = vmatpush1.msra.mxu0 0.0
  %583 = vmatprep.subr.mxu0 0.0
  %584 = vmatpush1.msra.mxu0 0.0
  %585 = vmatprep.subr.mxu0 0.0
  %586 = vmatpush1.msra.mxu0 0.0
  %587 = vmatprep.subr.mxu0 0.0
  %588 = vmatpush1.msra.mxu0 0.0
  %589 = vmatprep.subr.mxu0 0.0
  %590 = vmatpush1.msra.mxu0 0.0
  %591 = vmatprep.subr.mxu0 0.0
  %592 = vmatpush1.msra.mxu0 0.0
  %593 = vmatprep.subr.mxu0 0.0
  %594 = vmatpush1.msra.mxu0 0.0
  %595 = vmatprep.subr.mxu0 0.0
  %596 = vmatpush1.msra.mxu0 0.0
  %597 = vmatprep.subr.mxu0 0.0
  %598 = vmatpush1.msra.mxu0 0.0
  %599 = vmatprep.subr.mxu0 0.0
  %600 = vmatpush1.msra.mxu0 0.0
  %601 = vmatprep.subr.mxu0 0.0
  %602 = vmatpush1.msra.mxu0 0.0
  %603 = vmatprep.subr.mxu0 0.0
  %604 = vmatpush1.msra.mxu0 0.0
  %605 = vmatprep.subr.mxu0 0.0
  %606 = vmatpush1.msra.mxu0 0.0
  %607 = vmatprep.subr.mxu0 0.0
  %608 = vmatpush1.msra.mxu0 0.0
  %609 = vmatprep.subr.mxu0 0.0
  %610 = vmatpush1.msra.mxu0 0.0
  %611 = vmatprep.subr.mxu0 0.0
  %612 = vmatpush1.msra.mxu0 0.0
  %613 = vmatprep.subr.mxu0 0.0
  %614 = vmatpush1.msra.mxu0 0.0
  %615 = vmatprep.subr.mxu0 0.0
  %616 = vmatpush1.msra.mxu0 0.0
  %617 = vmatprep.subr.mxu0 0.0
  %618 = vmatpush1.msra.mxu0 0.0
  %619 = vmatprep.subr.mxu0 0.0
  %620 = vmatpush1.msra.mxu0 0.0
  %621 = vmatprep.subr.mxu0 0.0
  %622 = vmatpush1.msra.mxu0 0.0
  %623 = vmatprep.subr.mxu0 0.0
  %624 = vmatpush1.msra.mxu0 0.0
  %625 = vmatprep.subr.mxu0 0.0
  %626 = vmatpush1.msra.mxu0 0.0
  %627 = vmatprep.subr.mxu0 0.0
  %628 = vmatpush1.msra.mxu0 0.0
  %629 = vmatprep.subr.mxu0 0.0
  %630 = vmatpush1.msra.mxu0 0.0
  %631 = vmatprep.subr.mxu0 0.0
  %632 = vmatpush1.msra.mxu0 0.0
  %633 = vmatprep.subr.mxu0 0.0
  %634 = vmatpush1.msra.mxu0 0.0
  %635 = vmatprep.mubr.f32.mxu0 0.0
  %636 = vmatmul.mubr.f32.gmra.mrb[0].mxu0 %v569
  %v637 = vpop.f32.mrb[0].mxu0
  %v638 = vadd.f32 %v567, %v637
  %v639 = vpop.f32.mrb[0].mxu0
  %640 = vdwg.mxu0
  %s641 = scalar_lea.vmem [#allocation3], 56
  %642 = vst.msk [vmem:[%s641] sm:$0xff] %vm29, %v638
  %643 = vst.msk [vmem:[#allocation2] sm:$0xff] %vm29, %v638
  %v644 = vld [vmem:[#allocation3] sm:$0xff]
  %v645 = vld [vmem:[#allocation3 + $0x8] sm:$0xff]
  %v646 = vld [vmem:[#allocation3 + $0x10] sm:$0xff]
  %v647 = vld [vmem:[#allocation3 + $0x18] sm:$0xff]
  %v648 = vld [vmem:[#allocation3 + $0x20] sm:$0xff]
  %v649 = vld [vmem:[#allocation3 + $0x28] sm:$0xff]
  %v650 = vld [vmem:[#allocation3 + $0x30] sm:$0xff]
  %v651 = vld [vmem:[#allocation3 + $0x38] sm:$0xff]
  %v652 = vld [vmem:[%s3] sm:$0xff]
  %v653 = vld [vmem:[%s3 + $0x8] sm:$0xff]
  %v654 = vld [vmem:[%s3 + $0x10] sm:$0xff]
  %v655 = vld [vmem:[%s3 + $0x18] sm:$0xff]
  %v656 = vld [vmem:[%s1] sm:$0xff]
  %v657 = vld [vmem:[%s1 + $0x8] sm:$0xff]
  %v658 = vld [vmem:[%s1 + $0x10] sm:$0xff]
  %v659 = vld [vmem:[%s1 + $0x18] sm:$0xff]
  %v660 = vld [vmem:[%s1 + $0x20] sm:$0xff]
  %v661 = vld [vmem:[%s1 + $0x28] sm:$0xff]
  %v662 = vld [vmem:[%s1 + $0x30] sm:$0xff]
  %v663 = vld [vmem:[%s1 + $0x38] sm:$0xff]
  %v665 = vsel %vm29, %v644, 0
  %v668 = vsel %vm29, %v645, 0
  %v671 = vsel %vm29, %v646, 0
  %v674 = vsel %vm29, %v647, 0
  %v677 = vsel %vm29, %v648, 0
  %v680 = vsel %vm29, %v649, 0
  %v683 = vsel %vm29, %v650, 0
  %v686 = vsel %vm29, %v651, 0
  %688 = vmatprep.subr.mxu0 0.0
  %689 = vmatpush1.msra.mxu0 %v652
  %690 = vmatprep.subr.mxu0 0.0
  %691 = vmatpush1.msra.mxu0 %v653
  %692 = vmatprep.subr.mxu0 0.0
  %693 = vmatpush1.msra.mxu0 %v654
  %694 = vmatprep.subr.mxu0 0.0
  %695 = vmatpush1.msra.mxu0 %v655
  %696 = vmatprep.subr.mxu0 0.0
  %697 = vmatpush1.msra.mxu0 0.0
  %698 = vmatprep.subr.mxu0 0.0
  %699 = vmatpush1.msra.mxu0 0.0
  %700 = vmatprep.subr.mxu0 0.0
  %701 = vmatpush1.msra.mxu0 0.0
  %702 = vmatprep.subr.mxu0 0.0
  %703 = vmatpush1.msra.mxu0 0.0
  %704 = vmatprep.subr.mxu0 0.0
  %705 = vmatpush1.msra.mxu0 0.0
  %706 = vmatprep.subr.mxu0 0.0
  %707 = vmatpush1.msra.mxu0 0.0
  %708 = vmatprep.subr.mxu0 0.0
  %709 = vmatpush1.msra.mxu0 0.0
  %710 = vmatprep.subr.mxu0 0.0
  %711 = vmatpush1.msra.mxu0 0.0
  %712 = vmatprep.subr.mxu0 0.0
  %713 = vmatpush1.msra.mxu0 0.0
  %714 = vmatprep.subr.mxu0 0.0
  %715 = vmatpush1.msra.mxu0 0.0
  %716 = vmatprep.subr.mxu0 0.0
  %717 = vmatpush1.msra.mxu0 0.0
  %718 = vmatprep.subr.mxu0 0.0
  %719 = vmatpush1.msra.mxu0 0.0
  %720 = vmatprep.subr.mxu0 0.0
  %721 = vmatpush1.msra.mxu0 0.0
  %722 = vmatprep.subr.mxu0 0.0
  %723 = vmatpush1.msra.mxu0 0.0
  %724 = vmatprep.subr.mxu0 0.0
  %725 = vmatpush1.msra.mxu0 0.0
  %726 = vmatprep.subr.mxu0 0.0
  %727 = vmatpush1.msra.mxu0 0.0
  %728 = vmatprep.subr.mxu0 0.0
  %729 = vmatpush1.msra.mxu0 0.0
  %730 = vmatprep.subr.mxu0 0.0
  %731 = vmatpush1.msra.mxu0 0.0
  %732 = vmatprep.subr.mxu0 0.0
  %733 = vmatpush1.msra.mxu0 0.0
  %734 = vmatprep.subr.mxu0 0.0
  %735 = vmatpush1.msra.mxu0 0.0
  %736 = vmatprep.subr.mxu0 0.0
  %737 = vmatpush1.msra.mxu0 0.0
  %738 = vmatprep.subr.mxu0 0.0
  %739 = vmatpush1.msra.mxu0 0.0
  %740 = vmatprep.subr.mxu0 0.0
  %741 = vmatpush1.msra.mxu0 0.0
  %742 = vmatprep.subr.mxu0 0.0
  %743 = vmatpush1.msra.mxu0 0.0
  %744 = vmatprep.subr.mxu0 0.0
  %745 = vmatpush1.msra.mxu0 0.0
  %746 = vmatprep.subr.mxu0 0.0
  %747 = vmatpush1.msra.mxu0 0.0
  %748 = vmatprep.subr.mxu0 0.0
  %749 = vmatpush1.msra.mxu0 0.0
  %750 = vmatprep.subr.mxu0 0.0
  %751 = vmatpush1.msra.mxu0 0.0
  %752 = vmatprep.mubr.f32.mxu0 0.0
  %753 = vmatmul.mubr.f32.gmra.mrb[0].mxu0 %v665
  %v754 = vpop.f32.mrb[0].mxu0
  %v755 = vadd.f32 %v656, %v754
  %v756 = vpop.f32.mrb[0].mxu0
  %757 = vmatprep.mubr.f32.mxu0 0.0
  %758 = vmatmul.mubr.f32.gmra.mrb[0].mxu0 %v668
  %v759 = vpop.f32.mrb[0].mxu0
  %v760 = vadd.f32 %v657, %v759
  %v761 = vpop.f32.mrb[0].mxu0
  %762 = vmatprep.mubr.f32.mxu0 0.0
  %763 = vmatmul.mubr.f32.gmra.mrb[0].mxu0 %v671
  %v764 = vpop.f32.mrb[0].mxu0
  %v765 = vadd.f32 %v658, %v764
  %v766 = vpop.f32.mrb[0].mxu0
  %767 = vmatprep.mubr.f32.mxu0 0.0
  %768 = vmatmul.mubr.f32.gmra.mrb[0].mxu0 %v674
  %v769 = vpop.f32.mrb[0].mxu0
  %v770 = vadd.f32 %v659, %v769
  %v771 = vpop.f32.mrb[0].mxu0
  %772 = vmatprep.mubr.f32.mxu0 0.0
  %773 = vmatmul.mubr.f32.gmra.mrb[0].mxu0 %v677
  %v774 = vpop.f32.mrb[0].mxu0
  %v775 = vadd.f32 %v660, %v774
  %v776 = vpop.f32.mrb[0].mxu0
  %777 = vmatprep.mubr.f32.mxu0 0.0
  %778 = vmatmul.mubr.f32.gmra.mrb[0].mxu0 %v680
  %v779 = vpop.f32.mrb[0].mxu0
  %v780 = vadd.f32 %v661, %v779
  %v781 = vpop.f32.mrb[0].mxu0
  %782 = vmatprep.mubr.f32.mxu0 0.0
  %783 = vmatmul.mubr.f32.gmra.mrb[0].mxu0 %v683
  %v784 = vpop.f32.mrb[0].mxu0
  %v785 = vadd.f32 %v662, %v784
  %v786 = vpop.f32.mrb[0].mxu0
  %787 = vmatprep.mubr.f32.mxu0 0.0
  %788 = vmatmul.mubr.f32.gmra.mrb[0].mxu0 %v686
  %v789 = vpop.f32.mrb[0].mxu0
  %v790 = vadd.f32 %v663, %v789
  %v791 = vpop.f32.mrb[0].mxu0
  %792 = vdwg.mxu0
  %vm793 = vcmask 31744
  %794 = vst.msk [vmem:[%s4] sm:$0xff] %vm793, %v755
  %795 = vst.msk [vmem:[%s4 + $0x8] sm:$0xff] %vm793, %v760
  %796 = vst.msk [vmem:[%s4 + $0x10] sm:$0xff] %vm793, %v765
  %797 = vst.msk [vmem:[%s4 + $0x18] sm:$0xff] %vm793, %v770
  %798 = vst.msk [vmem:[%s4 + $0x20] sm:$0xff] %vm793, %v775
  %799 = vst.msk [vmem:[%s4 + $0x28] sm:$0xff] %vm793, %v780
  %800 = vst.msk [vmem:[%s4 + $0x30] sm:$0xff] %vm793, %v785
  %801 = vst.msk [vmem:[%s4 + $0x38] sm:$0xff] %vm793, %v790
  // Predicated region
  $region22: #{lssm_forward.1} parent=0 // pred_check
    _
  $region23: #{lssm_forward.1} parent=0 // pred_check_branch
    %803 = sbr.rel (0) target = $region25
  $region24: #{lssm_forward.1} parent=0 // pred_region
    _
  $region25: #{lssm_forward.1} parent=0 // pred_fallthru
    _
  // Predicated region
  $region26: #{lssm_forward.1} parent=0 // pred_check
    _
  $region27: #{lssm_forward.1} parent=0 // pred_check_branch
    %805 = sbr.rel (0) target = $region29
  $region28: #{lssm_forward.1} parent=0 // pred_region
    _
  $region29: #{lssm_forward.1} parent=0 // pred_fallthru
    _

</llo_original>
